<compile_context>
chip_gen: v6e
topology: v6e:2x2x1
jax: 0.10.0
libtpu: 0.0.40
codegen_flags: <defaults>
</compile_context>

<pallas_src>
import functools

import numpy as np
import jax
import jax.numpy as jnp
from jax.experimental import pallas as pl
from jax.experimental.pallas import tpu as pltpu


def attention_kernel(act_ref, w_ref, aux_ref, out_ref, *, B, S, H):
    # act_ref : (B*S + B, 4H)  [encoder_outputs rows ; hidden[-1] rows]
    # w_ref   : (4H, Npad)     [We^T | We^T@Wae | Wh^T@Wah | 0-pad]   Npad = 128-multiple
    # aux_ref : (3, H)         row0 = be, row1 = b_fused, row2 = v
    # out_ref : (B, H+S)       [context_vector | attn_weights]
    acts = act_ref[...]                         # (B*S+B, 4H)
    aux = aux_ref[...]                          # (3, H)
    be = aux[0:1, :]                            # (1, H)
    bf = aux[1:2, :]                            # (1, H)
    v = aux[2:3, :]                             # (1, H)

    # Single MXU matmul: K = 4H = 128 fills the systolic depth; wasted columns are free.
    big = jnp.dot(acts, w_ref[...], preferred_element_type=jnp.float32)   # (B*S+B, Npad)

    n = B * S
    ep = big[:n, 0:H] + be                      # (B*S, H)  projected encoder outputs
    e_enc = big[:n, H:2 * H]                    # (B*S, H)  encoder term of the energy
    e_hid = big[n:, 2 * H:3 * H] + bf           # (B, H)    hidden term of the energy

    # NOTE: these reshapes are free views because S (=8) is a multiple of the f32
    # sublane count; for non-aligned S they stay correct but materialize a relayout.
    e_enc3 = e_enc.reshape(B, S, H)
    ep3 = ep.reshape(B, S, H)

    energy = jnp.tanh(e_enc3 + e_hid[:, None, :])                         # (B, S, H)

    # scores[b, s] = sum_h v[h] * energy[b, s, h]   (lane-axis reduce)
    scores = jnp.sum(energy * v[None, :, :], axis=-1)                     # (B, S)

    # softmax over the sequence axis (lane-dense); exact divide (approx buys nothing at B=2)
    m = jnp.max(scores, axis=-1, keepdims=True)
    e = jnp.exp(scores - m)
    w = e / jnp.sum(e, axis=-1, keepdims=True)                            # (B, S)

    # context[b, :] = sum_s w[b, s] * ep[b, s, :]
    ctx = jnp.sum(w[:, :, None] * ep3, axis=1)                            # (B, H)

    # One lane-denser store: [context | attention weights]
    out_ref[...] = jnp.concatenate([ctx, w], axis=-1)                     # (B, H+S)


def prepare_attention_params(params, hidden_size):
    """One-time weight prep (hoisted out of the per-forward path), done in float64.

    Fuses the second-stage `attn` Linear into the first-stage projections:
      energy = tanh(enc @ (We^T @ Wae) + h @ (Wh^T @ Wah) + (bh@Wah + be@Wae + ba))
    and packs all three weight blocks side-by-side (zero-padded to 128 lanes) so a
    single matmul produces the encoder projection and both energy terms.
    """
    H = hidden_size
    f64 = lambda a: np.asarray(a, np.float64)
    we_t = f64(params["enc_w"]).T               # (4H, H)
    wh_t = f64(params["hid_w"]).T               # (4H, H)
    wa_t = f64(params["attn_w"]).T              # (2H, H)
    wah = wa_t[:H, :]                           # hidden half of the concat
    wae = wa_t[H:, :]                           # encoder half of the concat
    be = f64(params["enc_b"]).reshape(1, H)
    bh = f64(params["hid_b"]).reshape(1, H)
    ba = f64(params["attn_b"]).reshape(1, H)
    v = f64(params["v"]).reshape(1, H)

    in_dim = we_t.shape[0]                      # 4H
    n_pad = ((3 * H + 127) // 128) * 128        # pad packed N to full lanes
    w_big = np.zeros((in_dim, n_pad), np.float64)
    w_big[:, 0:H] = we_t                        # encoder projection
    w_big[:, H:2 * H] = we_t @ wae              # encoder energy term
    w_big[:, 2 * H:3 * H] = wh_t @ wah          # hidden energy term

    b_fused = bh @ wah + be @ wae + ba          # (1, H)
    aux = np.concatenate([be, b_fused, v], axis=0)   # (3, H)

    return {
        "w_big": jnp.asarray(w_big, jnp.float32),
        "aux": jnp.asarray(aux, jnp.float32),
    }


@functools.partial(jax.jit, static_argnums=(3,))
def attention_forward(hidden, encoder_outputs, prep, hidden_size):
    """JAX wrapper: only trivial reshapes/concat here; all math runs in the kernel."""
    L, B, in_dim = hidden.shape
    _, S, _ = encoder_outputs.shape
    H = hidden_size
    assert in_dim == 4 * H

    h_last = hidden[-1]                                   # (B, 4H)
    enc_2d = encoder_outputs.reshape(B * S, in_dim)       # lane-dense slab
    acts = jnp.concatenate([enc_2d, h_last], axis=0)      # (B*S + B, 4H) single input slab

    kernel = functools.partial(attention_kernel, B=B, S=S, H=H)
    vmem = lambda: pl.BlockSpec(memory_space=pltpu.MemorySpace.VMEM)

    out = pl.pallas_call(
        kernel,
        out_shape=jax.ShapeDtypeStruct((B, H + S), jnp.float32),
        in_specs=[vmem(), vmem(), vmem()],
        out_specs=vmem(),
    )(acts, prep["w_big"], prep["aux"])

    ctx = out[:, :H]          # (B, H)
    attn = out[:, H:]         # (B, S)
    return ctx, attn


def reference_forward(hidden, encoder_outputs, params, hidden_size):
    """Pure-JAX reference matching the PyTorch semantics (HIGHEST matmul precision)."""
    hp = jax.lax.Precision.HIGHEST
    h = jnp.dot(hidden[-1], params["hid_w"].T, precision=hp) + params["hid_b"]        # (B, H)
    enc = jnp.einsum("bsi,hi->bsh", encoder_outputs, params["enc_w"],
                     precision=hp) + params["enc_b"]                                   # (B, S, H)
    S = enc.shape[1]
    h_rep = jnp.repeat(h[:, None, :], S, axis=1)                                       # (B, S, H)
    cat = jnp.concatenate([h_rep, enc], axis=2)                                        # (B, S, 2H)
    energy = jnp.tanh(jnp.einsum("bsk,hk->bsh", cat, params["attn_w"],
                                 precision=hp) + params["attn_b"])                     # (B, S, H)
    scores = jnp.einsum("h,bsh->bs", params["v"][0], energy, precision=hp)             # (B, S)
    w = jax.nn.softmax(scores, axis=1)
    ctx = jnp.einsum("bs,bsh->bh", w, enc, precision=hp)
    return ctx, w


if __name__ == "__main__":
    hidden_size = 32
    scale_factor = 4
    in_dim = hidden_size * scale_factor
    L, B, S = 2, 2, 8

    key = jax.random.PRNGKey(0)
    keys = jax.random.split(key, 10)

    params = {
        "enc_w": jax.random.normal(keys[0], (hidden_size, in_dim), jnp.float32) * 0.05,
        "enc_b": jax.random.normal(keys[1], (hidden_size,), jnp.float32) * 0.05,
        "hid_w": jax.random.normal(keys[2], (hidden_size, in_dim), jnp.float32) * 0.05,
        "hid_b": jax.random.normal(keys[3], (hidden_size,), jnp.float32) * 0.05,
        "attn_w": jax.random.normal(keys[4], (hidden_size, 2 * hidden_size), jnp.float32) * 0.05,
        "attn_b": jax.random.normal(keys[5], (hidden_size,), jnp.float32) * 0.05,
        "v": jax.random.uniform(keys[6], (1, hidden_size), jnp.float32),
    }

    hidden = jax.random.normal(keys[7], (L, B, in_dim), jnp.float32)
    encoder_outputs = jax.random.normal(keys[8], (B, S, in_dim), jnp.float32)

    prep = prepare_attention_params(params, hidden_size)   # hoisted, one-time
    ctx, attn = attention_forward(hidden, encoder_outputs, prep, hidden_size)
    jax.block_until_ready((ctx, attn))

    ctx_ref, attn_ref = reference_forward(hidden, encoder_outputs, params, hidden_size)
    assert ctx.shape == (B, hidden_size) and attn.shape == (B, S)
    # Tolerance covers a possible bf16 single-pass MXU matmul at default precision;
    # with the exact softmax divide and f64 weight fusion the typical error is ~1e-6.
    assert jnp.allclose(ctx, ctx_ref, atol=2e-3, rtol=2e-3)
    assert jnp.allclose(attn, attn_ref, atol=2e-3, rtol=2e-3)

    print("KERNEL_OK")
</pallas_src>

<mosaic_0001>
module attributes {stable_mosaic.version = 11 : i64} {
  func.func @attention_kernel(%arg0: memref<18x128xf32, #tpu.memory_space<vmem>>, %arg1: memref<128x128xf32, #tpu.memory_space<vmem>>, %arg2: memref<3x32xf32, #tpu.memory_space<vmem>>, %arg3: memref<2x40xf32, #tpu.memory_space<vmem>>) attributes {dimension_semantics = [], scalar_prefetch = 0 : i64, scratch_operands = 0 : i64, tpu.core_type = #tpu.core_type<tc>} {
    %c0 = arith.constant 0 : index
    %c0_0 = arith.constant 0 : index
    %0 = vector.load %arg0[%c0, %c0_0] : memref<18x128xf32, #tpu.memory_space<vmem>>, vector<18x128xf32>
    %c0_1 = arith.constant 0 : index
    %c0_2 = arith.constant 0 : index
    %1 = vector.load %arg2[%c0_1, %c0_2] : memref<3x32xf32, #tpu.memory_space<vmem>>, vector<3x32xf32>
    %2 = vector.extract_strided_slice %1 {offsets = [0, 0], sizes = [1, 32], strides = [1, 1]} : vector<3x32xf32> to vector<1x32xf32>
    %3 = vector.extract_strided_slice %1 {offsets = [1, 0], sizes = [1, 32], strides = [1, 1]} : vector<3x32xf32> to vector<1x32xf32>
    %4 = vector.extract_strided_slice %1 {offsets = [2, 0], sizes = [1, 32], strides = [1, 1]} : vector<3x32xf32> to vector<1x32xf32>
    %c0_3 = arith.constant 0 : index
    %c0_4 = arith.constant 0 : index
    %5 = vector.load %arg1[%c0_3, %c0_4] : memref<128x128xf32, #tpu.memory_space<vmem>>, vector<128x128xf32>
    %cst = arith.constant dense<0.000000e+00> : vector<18x128xf32>
    %6 = tpu.matmul %0, %5, %cst {dimension_numbers = #tpu.dot_dimension_numbers<[1], [0], [0], [1], [0, 0, 1, 1], [], []>} : vector<18x128xf32>, vector<128x128xf32>, vector<18x128xf32> -> vector<18x128xf32>
    %7 = vector.extract_strided_slice %6 {offsets = [0, 0], sizes = [16, 32], strides = [1, 1]} : vector<18x128xf32> to vector<16x32xf32>
    %8 = vector.broadcast %2 : vector<1x32xf32> to vector<16x32xf32>
    %9 = arith.addf %7, %8 : vector<16x32xf32>
    %10 = vector.extract_strided_slice %6 {offsets = [0, 32], sizes = [16, 32], strides = [1, 1]} : vector<18x128xf32> to vector<16x32xf32>
    %11 = vector.extract_strided_slice %6 {offsets = [16, 64], sizes = [2, 32], strides = [1, 1]} : vector<18x128xf32> to vector<2x32xf32>
    %12 = vector.broadcast %3 : vector<1x32xf32> to vector<2x32xf32>
    %13 = arith.addf %11, %12 : vector<2x32xf32>
    %14 = vector.shape_cast %10 : vector<16x32xf32> to vector<2x8x32xf32>
    %15 = vector.shape_cast %9 : vector<16x32xf32> to vector<2x8x32xf32>
    %16 = vector.shape_cast %13 : vector<2x32xf32> to vector<2x1x32xf32>
    %17 = vector.broadcast %16 : vector<2x1x32xf32> to vector<2x8x32xf32>
    %18 = arith.addf %14, %17 : vector<2x8x32xf32>
    %19 = math.tanh %18 : vector<2x8x32xf32>
    %20 = vector.shape_cast %4 : vector<1x32xf32> to vector<1x1x32xf32>
    %21 = vector.broadcast %20 : vector<1x1x32xf32> to vector<2x8x32xf32>
    %22 = arith.mulf %19, %21 : vector<2x8x32xf32>
    %cst_5 = arith.constant dense<0.000000e+00> : vector<2x8xf32>
    %23 = vector.multi_reduction <add>, %22, %cst_5 [2] : vector<2x8x32xf32> to vector<2x8xf32>
    %cst_6 = arith.constant dense<0xFF800000> : vector<2xf32>
    %24 = vector.multi_reduction <maximumf>, %23, %cst_6 [1] : vector<2x8xf32> to vector<2xf32>
    %25 = vector.shape_cast %24 : vector<2xf32> to vector<2x1xf32>
    %26 = vector.broadcast %25 : vector<2x1xf32> to vector<2x8xf32>
    %27 = arith.subf %23, %26 : vector<2x8xf32>
    %28 = math.exp %27 : vector<2x8xf32>
    %cst_7 = arith.constant dense<0.000000e+00> : vector<2xf32>
    %29 = vector.multi_reduction <add>, %28, %cst_7 [1] : vector<2x8xf32> to vector<2xf32>
    %30 = vector.shape_cast %29 : vector<2xf32> to vector<2x1xf32>
    %31 = vector.broadcast %30 : vector<2x1xf32> to vector<2x8xf32>
    %32 = arith.divf %28, %31 : vector<2x8xf32>
    %33 = vector.shape_cast %32 : vector<2x8xf32> to vector<2x8x1xf32>
    %34 = vector.broadcast %33 : vector<2x8x1xf32> to vector<2x8x32xf32>
    %35 = arith.mulf %34, %15 : vector<2x8x32xf32>
    %cst_8 = arith.constant dense<0.000000e+00> : vector<2x32xf32>
    %36 = vector.multi_reduction <add>, %35, %cst_8 [1] : vector<2x8x32xf32> to vector<2x32xf32>
    %37 = tpu.concatenate %36, %32 in 1 : vector<2x32xf32>, vector<2x8xf32> -> vector<2x40xf32>
    %c0_9 = arith.constant 0 : index
    %c0_10 = arith.constant 0 : index
    %38 = vector.load %arg3[%c0_9, %c0_10] : memref<2x40xf32, #tpu.memory_space<vmem>>, vector<2x40xf32>
    tpu.vector_store %arg3[%c0_9, %c0_10], %37 {strides = array<i32>} : memref<2x40xf32, #tpu.memory_space<vmem>>, vector<2x40xf32>,
    return
  }
}

</mosaic_0001>

<llo_original>
// kernel: attention_forward.1
$region0: #{attention_forward.1}
  #allocation0 [shape = 'u32[]', space=smem, size = 0x4, offset = 0x4, fixed_abs, tag = 'smem constant byte address 0x4 - core index']
  #allocation1 [shape = 'u32[144,128]{1,0:T(1,128)}', space=vmem, size = 0x12000, scoped, tag = 'internal scratch']
  %s0 = inlined_call_operand.vmem [shape: f32[18,128], index: 0, kind: input, shape index: {}]
  %s1 = inlined_call_operand.hbm [shape: f32[128,128], index: 1, kind: input, shape index: {}]
  %s2 = inlined_call_operand.vmem [shape: f32[3,32], index: 2, kind: input, shape index: {}]
  %s3 = inlined_call_operand.vmem [shape: f32[2,40], index: 3, kind: output, shape index: {}]
  %s4 = sld [smem:[#allocation0]]
  $region26: #{attention_forward.1} parent=0
    _
  %s6 = ssub.s32 1, %s4
  %s7 = scalar_select 0, %s6, %s4
  $region1: #{attention_forward.1} parent=0
    #allocation2 [shape = 'u8[65536]{0}', space=vmem, size = 0x10000, scoped, tag = 'input window, operand 1, single buffered']
    #allocation3 [shape = 's32[1]{0}', space=sflag, size = 0x4, scoped, tag = 'scoped memory for attention_forward.1']
    %8 = vsyncpa [#allocation3], 0
    // Predicated region
    $region2: #{attention_forward.1} parent=1 // pred_check
      _
    $region3: #{attention_forward.1} parent=1 // pred_check_branch
      %10 = sbr.rel (0) target = $region5
    $region4: #{attention_forward.1} parent=1 // pred_region
      _
    $region5: #{attention_forward.1} parent=1 // pred_fallthru
      _
    // Predicated region
    $region6: #{attention_forward.1} parent=1 // pred_check
      _
    $region7: #{attention_forward.1} parent=1 // pred_check_branch
      %12 = sbr.rel (0) target = $region9
    $region8: #{attention_forward.1} parent=1 // pred_region
      %s14 = ssub.s32 2048, 2048
      %15 = vsyncadd [#allocation3], %s14
      %s16 = sshll.u32 [#allocation2], 4
      %s17 = int_to_ptr.vmem [resolvable:$true] %s16
      %22 = dma.hbm_to_vmem [thread:$0]  %s1, 2048, %s17, [#allocation3], 128, 128, 8
    $region9: #{attention_forward.1} parent=1 // pred_fallthru
      _
    // Predicated region
    $region10: #{attention_forward.1} parent=1 // pred_check
      _
    $region11: #{attention_forward.1} parent=1 // pred_check_branch
      %24 = sbr.rel (0) target = $region13
    $region12: #{attention_forward.1} parent=1 // pred_region
      _
    $region13: #{attention_forward.1} parent=1 // pred_fallthru
      _
    // Predicated region
    $region14: #{attention_forward.1} parent=1 // pred_check
      _
    $region15: #{attention_forward.1} parent=1 // pred_check_branch
      %26 = sbr.rel (0) target = $region17
    $region16: #{attention_forward.1} parent=1 // pred_region
      %27 = dma.done [#allocation3], 2048
    $region17: #{attention_forward.1} parent=1 // pred_fallthru
      _
    %v28 = vld [vmem:[%s0] sm:$0xff]
    %v29 = vld [vmem:[%s0 + $0x8] sm:$0xff]
    %v30 = vld [vmem:[%s0 + $0x10] sm:$0x3]
    %v31 = vld [vmem:[%s2] sm:$0x7]
    %v32 = vld [vmem:[#allocation2] sm:$0xff]
    %v33 = vld [vmem:[#allocation2 + $0x8] sm:$0xff]
    %v34 = vld [vmem:[#allocation2 + $0x10] sm:$0xff]
    %v35 = vld [vmem:[#allocation2 + $0x18] sm:$0xff]
    %v36 = vld [vmem:[#allocation2 + $0x20] sm:$0xff]
    %v37 = vld [vmem:[#allocation2 + $0x28] sm:$0xff]
    %v38 = vld [vmem:[#allocation2 + $0x30] sm:$0xff]
    %v39 = vld [vmem:[#allocation2 + $0x38] sm:$0xff]
    %v40 = vld [vmem:[#allocation2 + $0x40] sm:$0xff]
    %v41 = vld [vmem:[#allocation2 + $0x48] sm:$0xff]
    %v42 = vld [vmem:[#allocation2 + $0x50] sm:$0xff]
    %v43 = vld [vmem:[#allocation2 + $0x58] sm:$0xff]
    %v44 = vld [vmem:[#allocation2 + $0x60] sm:$0xff]
    %v45 = vld [vmem:[#allocation2 + $0x68] sm:$0xff]
    %v46 = vld [vmem:[#allocation2 + $0x70] sm:$0xff]
    %v47 = vld [vmem:[#allocation2 + $0x78] sm:$0xff]
    %48 = vmatprep.subr.mxu0 0.0
    %49 = vmatpush1.msra.mxu0 %v47
    %50 = vmatprep.subr.mxu0 0.0
    %51 = vmatpush1.msra.mxu0 %v46
    %52 = vmatprep.subr.mxu0 0.0
    %53 = vmatpush1.msra.mxu0 %v45
    %54 = vmatprep.subr.mxu0 0.0
    %55 = vmatpush1.msra.mxu0 %v44
    %56 = vmatprep.subr.mxu0 0.0
    %57 = vmatpush1.msra.mxu0 %v43
    %58 = vmatprep.subr.mxu0 0.0
    %59 = vmatpush1.msra.mxu0 %v42
    %60 = vmatprep.subr.mxu0 0.0
    %61 = vmatpush1.msra.mxu0 %v41
    %62 = vmatprep.subr.mxu0 0.0
    %63 = vmatpush1.msra.mxu0 %v40
    %64 = vmatprep.subr.mxu0 0.0
    %65 = vmatpush1.msra.mxu0 %v39
    %66 = vmatprep.subr.mxu0 0.0
    %67 = vmatpush1.msra.mxu0 %v38
    %68 = vmatprep.subr.mxu0 0.0
    %69 = vmatpush1.msra.mxu0 %v37
    %70 = vmatprep.subr.mxu0 0.0
    %71 = vmatpush1.msra.mxu0 %v36
    %72 = vmatprep.subr.mxu0 0.0
    %73 = vmatpush1.msra.mxu0 %v35
    %74 = vmatprep.subr.mxu0 0.0
    %75 = vmatpush1.msra.mxu0 %v34
    %76 = vmatprep.subr.mxu0 0.0
    %77 = vmatpush1.msra.mxu0 %v33
    %78 = vmatprep.subr.mxu0 0.0
    %79 = vmatpush1.msra.mxu0 %v32
    %80 = vmatprep.subr.mxu0 0.0
    %81 = vmatpush2.msra.mxu0 0.0
    %82 = vmatprep.subr.mxu0 0.0
    %83 = vmatpush2.msra.mxu0 0.0
    %84 = vmatprep.subr.mxu0 0.0
    %85 = vmatpush2.msra.mxu0 0.0
    %86 = vmatprep.subr.mxu0 0.0
    %87 = vmatpush2.msra.mxu0 0.0
    %88 = vmatprep.subr.mxu0 0.0
    %89 = vmatpush2.msra.mxu0 0.0
    %90 = vmatprep.subr.mxu0 0.0
    %91 = vmatpush2.msra.mxu0 0.0
    %92 = vmatprep.subr.mxu0 0.0
    %93 = vmatpush2.msra.mxu0 0.0
    %94 = vmatprep.subr.mxu0 0.0
    %95 = vmatpush2.msra.mxu0 0.0
    %96 = vmatprep.subr.mxu0 0.0
    %97 = vmatpush2.msra.mxu0 0.0
    %98 = vmatprep.subr.mxu0 0.0
    %99 = vmatpush2.msra.mxu0 0.0
    %100 = vmatprep.subr.mxu0 0.0
    %101 = vmatpush2.msra.mxu0 0.0
    %102 = vmatprep.subr.mxu0 0.0
    %103 = vmatpush2.msra.mxu0 0.0
    %104 = vmatprep.subr.mxu0 0.0
    %105 = vmatpush2.msra.mxu0 0.0
    %106 = vmatprep.subr.mxu0 0.0
    %107 = vmatpush2.msra.mxu0 0.0
    %108 = vmatprep.subr.mxu0 0.0
    %109 = vmatpush2.msra.mxu0 0.0
    %110 = vmatprep.subr.mxu0 0.0
    %111 = vmatpush2.msra.mxu0 0.0
    %112 = vmatprep.mubr.f32.mxu0 0.0
    %113 = vmatmul.mubr.f32.gmra.mxu0 %v28
    %v114 = vpop.f32.mrf.mxu0
    %v115 = vadd.f32 0.0, %v114
    %v116 = vpop.f32.mrf.mxu0
    %117 = vmatprep.mubr.f32.mxu0 0.0
    %118 = vmatmul.mubr.f32.gmra.mxu0 %v29
    %v119 = vpop.f32.mrf.mxu0
    %v120 = vadd.f32 0.0, %v119
    %v121 = vpop.f32.mrf.mxu0
    %122 = vmatprep.mubr.f32.mxu0 0.0
    %123 = vmatmul.mubr.f32.gmra.mxu0 %v30
    %v124 = vpop.f32.mrf.mxu0
    %v125 = vadd.f32 0.0, %v124
    %v126 = vpop.f32.mrf.mxu0
    %127 = vdwg.mxu0
    %v128 = vlaneseq
    %v129 = vshrl.u32 %v128, 7
    %v130 = vsub.s32 0, %v129
    %v131 = vrot.slane %v31, %v130
    %v132 = vadd.f32 %v115, %v131
    %v133 = vadd.f32 %v120, %v131
    %v134 = vlaneseq
    %v135 = vshrl.u32 %v134, 7
    %v136 = vsub.s32 1, %v135
    %v137 = vrot.slane %v31, %v136
    %139 = vrot.lane.b32.xlu0 %v137, 64
    %v140 = vpop.permute.xlu0 %139
    %v142 = vadd.f32 %v125, %v140
    %v145 = vunpack.c.l.s4 1966171168
    %v146 = vunpack.c.0.s8 %v145
    %v147 = vlaneseq
    %v148 = vshrl.u32 %v147, 7
    %v149 = vsub.s32 %v146, %v148
    %v150 = vrot.slane %v142, %v149
    %v151 = vcombine.high %v150, %v150
    %v153 = vunpack.c.l.s4 1966171168
    %v154 = vunpack.c.0.s8 %v153
    %v155 = vlaneseq
    %v156 = vshrl.u32 %v155, 7
    %v157 = vsub.s32 %v154, %v156
    %v158 = vrot.slane %v150, %v157
    %v160 = vunpack.c.l.s4 1966171168
    %v161 = vunpack.c.0.s8 %v160
    %v162 = vlaneseq
    %v163 = vshrl.u32 %v162, 7
    %v164 = vsub.s32 %v161, %v163
    %v165 = vrot.slane %v151, %v164
    %v166 = vlaneseq
    %v167 = vshrl.u32 %v166, 7
    %v168 = vsub.s32 0, %v167
    %v169 = vrot.slane %v158, %v168
    %v170 = vlaneseq
    %v171 = vshrl.u32 %v170, 7
    %v172 = vsub.s32 0, %v171
    %v173 = vrot.slane %v165, %v172
    %174 = vrot.lane.b32.xlu0 %v169, 96
    %v175 = vpop.permute.xlu0 %174
    %176 = vrot.lane.b32.xlu0 %v173, 96
    %v177 = vpop.permute.xlu0 %176
    %v180 = vadd.f32 %v115, %v175
    %v181 = vadd.f32 %v120, %v177
    %v182 = vtanh.pop %v180
    %v183 = vtanh.pop %v181
    %v184 = vlaneseq
    %v185 = vshrl.u32 %v184, 7
    %v186 = vsub.s32 2, %v185
    %v187 = vrot.slane %v31, %v186
    %189 = vrot.lane.b32.xlu0 %v187, 32
    %v190 = vpop.permute.xlu0 %189
    %v192 = vmul.f32 %v182, %v190
    %v193 = vmul.f32 %v183, %v190
    %196 = vrot.lane.b32.xlu0 %v192, 96
    %v197 = vpop.permute.xlu0 %196
    %198 = vrot.lane.b32.xlu0 %v193, 96
    %v199 = vpop.permute.xlu0 %198
    %vm202 = vcmask 261120
    %v203 = vsel %vm202, %v197, 0.0
    %204 = vadd.xlane.f32.xlu0 %v203
    %v205 = vpop.xlane.xlu0 %204
    %v206 = vsel %vm202, %v199, 0.0
    %207 = vadd.xlane.f32.xlu0 %v206
    %v208 = vpop.xlane.xlu0 %207
    %v211 = vlaneseq
    %v212 = vand.u32 %v211, 127
    %v213 = vlaneseq
    %v214 = vshrl.u32 %v213, 7
    %v215 = vsub.s32 %v212, %v214
    %v216 = vrot.slane %v205, %v215
    %v217 = vlaneseq
    %v218 = vshrl.u32 %v217, 7
    %v219 = vsub.s32 %v212, %v218
    %v220 = vrot.slane %v208, %v219
    %vm221 = vcmask 1041409
    %v222 = vsel %vm221, %v220, %v216
    %vm224 = vcmask 58368
    %v225 = vsel %vm224, %v222, -inf
    %226 = vmax.xlane.f32.xlu0 %v225
    %v227 = vpop.xlane.xlu0 %226
    %v229 = vlaneseq
    %v230 = vshrl.u32 %v229, 7
    %v231 = vsub.s32 0, %v230
    %v232 = vrot.slane %v227, %v231
    %v233 = vlaneseq
    %v234 = vshrl.u32 %v233, 7
    %v235 = vsub.s32 1, %v234
    %v236 = vrot.slane %v227, %v235
    %v239 = vsub.f32 %v205, %v232
    %v240 = vsub.f32 %v208, %v236
    %v241 = vmul.f32 %v239, 1.442695
    %v242 = vpow.pop %v241
    %v243 = vmul.f32 %v240, 1.442695
    %v244 = vpow.pop %v243
    %247 = vset.pattern.permute.xlu0 0
    %248 = vperm.xlu0 %247, %v242
    %v249 = vpop.permute.xlu0 %248
    %250 = vset.pattern.permute.xlu0 0
    %251 = vperm.xlu0 %250, %v244
    %v252 = vpop.permute.xlu0 %251
    %v253 = vlaneseq
    %v254 = vshrl.u32 %v253, 7
    %v255 = vsub.s32 %v212, %v254
    %v256 = vrot.slane %v249, %v255
    %v257 = vlaneseq
    %v258 = vshrl.u32 %v257, 7
    %v259 = vsub.s32 %v212, %v258
    %v260 = vrot.slane %v252, %v259
    %v261 = vsel %vm221, %v260, %v256
    %v263 = vsel %vm224, %v261, 0.0
    %264 = vadd.xlane.f32.xlu0 %v263
    %v265 = vpop.xlane.xlu0 %264
    %v267 = vlaneseq
    %v268 = vshrl.u32 %v267, 7
    %v269 = vsub.s32 0, %v268
    %v270 = vrot.slane %v265, %v269
    %v271 = vlaneseq
    %v272 = vshrl.u32 %v271, 7
    %v273 = vsub.s32 1, %v272
    %v274 = vrot.slane %v265, %v273
    %v277 = vrcp.pop %v270
    %v278 = vmul.f32 %v242, %v277
    %v279 = vrcp.pop %v274
    %v280 = vmul.f32 %v244, %v279
    %282 = vset.pattern.permute.xlu0 0
    %283 = vperm.xlu0 %282, %v278
    %v284 = vpop.permute.xlu0 %283
    %287 = vset.pattern.permute.xlu0 0
    %288 = vperm.xlu0 %287, %v280
    %v289 = vpop.permute.xlu0 %288
    %v291 = vmul.f32 %v284, %v132
    %v292 = vmul.f32 %v289, %v133
    %v293 = vsel %vm202, %v291, 0.0
    %v294 = vrot.slane %v293, 4
    %v295 = vadd.f32 %v293, %v294
    %v296 = vrot.slane %v295, 2
    %v297 = vadd.f32 %v295, %v296
    %v298 = vrot.slane %v297, 1
    %v299 = vadd.f32 %v297, %v298
    %v300 = vsel %vm202, %v292, 0.0
    %v301 = vrot.slane %v300, 4
    %v302 = vadd.f32 %v300, %v301
    %v303 = vrot.slane %v302, 2
    %v304 = vadd.f32 %v302, %v303
    %v305 = vrot.slane %v304, 1
    %v306 = vadd.f32 %v304, %v305
    %v309 = vsel %vm221, %v306, %v299
    %v311 = vadd.s32 %v212, 4294967264
    %v312 = vlaneseq
    %v313 = vshrl.u32 %v312, 7
    %v314 = vsub.s32 %v311, %v313
    %v315 = vrot.slane %v284, %v314
    %v316 = vlaneseq
    %v317 = vshrl.u32 %v316, 7
    %v318 = vsub.s32 %v311, %v317
    %v319 = vrot.slane %v289, %v318
    %v320 = vsel %vm221, %v319, %v315
    %v322 = vsel %vm202, %v309, %v320
    %vm323 = vcmask 320512
    %324 = vst.msk [vmem:[%s3] sm:$0x3] %vm323, %v322
    // Predicated region
    $region18: #{attention_forward.1} parent=1 // pred_check
      _
    $region19: #{attention_forward.1} parent=1 // pred_check_branch
      %326 = sbr.rel (0) target = $region21
    $region20: #{attention_forward.1} parent=1 // pred_region
      _
    $region21: #{attention_forward.1} parent=1 // pred_fallthru
      _
    // Predicated region
    $region22: #{attention_forward.1} parent=1 // pred_check
      _
    $region23: #{attention_forward.1} parent=1 // pred_check_branch
      %328 = sbr.rel (0) target = $region25
    $region24: #{attention_forward.1} parent=1 // pred_region
      _
    $region25: #{attention_forward.1} parent=1 // pred_fallthru
      _
    %329 = vsyncpa [#allocation3], 1

</llo_original>
